<compile_context>
chip_gen: v7x
topology: tpu7x:2x2x1
jax: 0.10.0
libtpu: 0.0.40
codegen_flags: <defaults>
</compile_context>

<pallas_src>
import functools

import jax
import jax.numpy as jnp
from jax import lax
from jax.experimental import pallas as pl
from jax.experimental.pallas import tpu as pltpu  # noqa: F401  (used when the grid/tiling TODO lands)

# ------------------------------ synthetic config ------------------------------
HIDDEN = 32
INTERMEDIATE = 64
LN_EPS = 1e-12
ENTITY_AWARE_OUTPUT = True


# ------------------------------ Pallas kernel --------------------------------
def _fused_output_kernel(x_ref, res_ref, w_ref, p_ref, o_ref, *, eps, hidden):
    """One matmul [Mt+Me, I] @ [I, 2H] + bias + residual + per-half LayerNorm.

    p_ref rows: 0 = bias (b | eb), 1 = gamma (g | eg), 2 = beta (beta | ebeta), each [2H].
    Output slab: rows 0:Mt valid in columns 0:H (token), rows Mt: valid in columns H:2H (entity).
    """
    H = hidden

    # Feed the MXU directly (no upcast) — f32 accumulation via preferred_element_type.
    y = jnp.dot(x_ref[...], w_ref[...], preferred_element_type=jnp.float32)   # [M, 2H]
    # Bias + residual (dropout is identity in eval mode); keep math in f32.
    y = y + p_ref[0:1, :].astype(jnp.float32) + res_ref[...].astype(jnp.float32)

    # LayerNorm over each H-wide half (token params live in the left half,
    # entity params in the right half).
    left, right = y[:, :H], y[:, H:]
    m_l = jnp.mean(left, axis=-1, keepdims=True)
    m_r = jnp.mean(right, axis=-1, keepdims=True)
    v_l = jnp.mean((left - m_l) ** 2, axis=-1, keepdims=True)
    v_r = jnp.mean((right - m_r) ** 2, axis=-1, keepdims=True)

    col = lax.broadcasted_iota(jnp.int32, y.shape, 1)
    is_left = col < H
    mean = jnp.where(is_left, m_l, m_r)
    rstd = jnp.where(is_left, lax.rsqrt(v_l + eps), lax.rsqrt(v_r + eps))

    gamma = p_ref[1:2, :].astype(jnp.float32)
    beta = p_ref[2:3, :].astype(jnp.float32)
    # Single lane-dense [M, 2H] store (no 32-lane masked partial stores).
    o_ref[...] = ((y - mean) * rstd * gamma + beta).astype(o_ref.dtype)


# ------------------------------ wrapper ---------------------------------------
def entity_aware_bert_output(
    token_intermediate, entity_intermediate,
    word_attention_output, entity_attention_output,
    params, *, entity_aware_output=ENTITY_AWARE_OUTPUT, eps=LN_EPS,
):
    """EntityAwareBertOutput.forward as one fused pallas_call.

    token_intermediate:      [B, T, I]
    entity_intermediate:     [B, E, I]
    word_attention_output:   [B, T, H]
    entity_attention_output: [B, E, H]
    """
    B, T, I = token_intermediate.shape
    E = entity_intermediate.shape[1]
    H = word_attention_output.shape[-1]
    Mt, Me = B * T, B * E
    dtype = token_intermediate.dtype

    tok_x = token_intermediate.reshape(Mt, I)
    ent_x = entity_intermediate.reshape(Me, I)
    tok_res = word_attention_output.reshape(Mt, H)
    ent_res = entity_attention_output.reshape(Me, H)

    w, b = params["dense"]["w"], params["dense"]["b"]
    g, beta = params["ln"]["g"], params["ln"]["b"]
    if entity_aware_output:
        ew, eb = params["entity_dense"]["w"], params["entity_dense"]["b"]
        eg, ebeta = params["entity_ln"]["g"], params["entity_ln"]["b"]
    else:
        ew, eb, eg, ebeta = w, b, g, beta

    # Column-stack both branch weights -> single MXU op; stack params into one slab.
    w_cat = jnp.concatenate([w, ew], axis=1)                            # [I, 2H]
    p_slab = jnp.stack([jnp.concatenate([b, eb]),
                        jnp.concatenate([g, eg]),
                        jnp.concatenate([beta, ebeta])], axis=0)        # [3, 2H]

    # Row-stack activations; residuals go in each branch's column half.
    x_all = jnp.concatenate([tok_x, ent_x], axis=0)                     # [Mt+Me, I]
    res_all = jnp.concatenate(
        [jnp.concatenate([tok_res, jnp.zeros((Mt, H), tok_res.dtype)], axis=1),
         jnp.concatenate([jnp.zeros((Me, H), ent_res.dtype), ent_res], axis=1)],
        axis=0)                                                         # [Mt+Me, 2H]

    out_slab = pl.pallas_call(
        functools.partial(_fused_output_kernel, eps=eps, hidden=H),
        out_shape=jax.ShapeDtypeStruct((Mt + Me, 2 * H), dtype),
    )(x_all, res_all, w_cat, p_slab)

    tok_out = out_slab[:Mt, :H].reshape(B, T, H)
    ent_out = out_slab[Mt:, H:].reshape(B, E, H)
    return tok_out, ent_out


# ------------------------------ parameters ------------------------------------
def init_params(key, intermediate=INTERMEDIATE, hidden=HIDDEN, scale=0.02):
    k0, k1 = jax.random.split(key, 2)
    return {
        "dense": {"w": jax.random.normal(k0, (intermediate, hidden), jnp.float32) * scale,
                  "b": jnp.zeros((hidden,), jnp.float32)},
        "ln": {"g": jnp.ones((hidden,), jnp.float32), "b": jnp.zeros((hidden,), jnp.float32)},
        "entity_dense": {"w": jax.random.normal(k1, (intermediate, hidden), jnp.float32) * scale,
                         "b": jnp.zeros((hidden,), jnp.float32)},
        "entity_ln": {"g": jnp.ones((hidden,), jnp.float32), "b": jnp.zeros((hidden,), jnp.float32)},
    }


# ------------------------------ pure-JAX reference -----------------------------
def _reference(tok_x, ent_x, tok_res, ent_res, params, entity_aware_output, eps):
    def ln(x, g, b):
        mean = jnp.mean(x, axis=-1, keepdims=True)
        var = jnp.mean((x - mean) ** 2, axis=-1, keepdims=True)
        return (x - mean) * jax.lax.rsqrt(var + eps) * g + b

    tok = ln(tok_x @ params["dense"]["w"] + params["dense"]["b"] + tok_res,
             params["ln"]["g"], params["ln"]["b"])
    if entity_aware_output:
        ent = ln(ent_x @ params["entity_dense"]["w"] + params["entity_dense"]["b"] + ent_res,
                 params["entity_ln"]["g"], params["entity_ln"]["b"])
    else:
        ent = ln(ent_x @ params["dense"]["w"] + params["dense"]["b"] + ent_res,
                 params["ln"]["g"], params["ln"]["b"])
    return tok, ent


# ------------------------------ main --------------------------------------------
if __name__ == "__main__":
    key = jax.random.PRNGKey(0)
    k_params, k_ti, k_ei, k_wa, k_ea = jax.random.split(key, 5)

    params = init_params(k_params)

    B, T, E = 2, 8, 4
    token_intermediate = jax.random.normal(k_ti, (B, T, INTERMEDIATE), jnp.float32)
    entity_intermediate = jax.random.normal(k_ei, (B, E, INTERMEDIATE), jnp.float32)
    word_attention_output = jax.random.normal(k_wa, (B, T, HIDDEN), jnp.float32)
    entity_attention_output = jax.random.normal(k_ea, (B, E, HIDDEN), jnp.float32)

    fwd = jax.jit(functools.partial(entity_aware_bert_output,
                                    entity_aware_output=ENTITY_AWARE_OUTPUT, eps=LN_EPS))
    tok_out, ent_out = fwd(token_intermediate, entity_intermediate,
                           word_attention_output, entity_attention_output, params)
    jax.block_until_ready((tok_out, ent_out))

    # correctness check against pure-JAX reference
    ref_tok, ref_ent = _reference(
        token_intermediate.reshape(B * T, INTERMEDIATE),
        entity_intermediate.reshape(B * E, INTERMEDIATE),
        word_attention_output.reshape(B * T, HIDDEN),
        entity_attention_output.reshape(B * E, HIDDEN),
        params, ENTITY_AWARE_OUTPUT, LN_EPS,
    )
    assert tok_out.shape == (B, T, HIDDEN)
    assert ent_out.shape == (B, E, HIDDEN)
    assert jnp.allclose(tok_out.reshape(B * T, HIDDEN), ref_tok, atol=1e-5, rtol=1e-5)
    assert jnp.allclose(ent_out.reshape(B * E, HIDDEN), ref_ent, atol=1e-5, rtol=1e-5)
    assert bool(jnp.all(jnp.isfinite(tok_out))) and bool(jnp.all(jnp.isfinite(ent_out)))
    print("KERNEL_OK")
</pallas_src>

<mosaic_0001>
module attributes {stable_mosaic.version = 11 : i64} {
  func.func @_fused_output_kernel(%arg0: memref<24x64xf32, #tpu.memory_space<vmem>>, %arg1: memref<24x64xf32, #tpu.memory_space<vmem>>, %arg2: memref<64x64xf32, #tpu.memory_space<vmem>>, %arg3: memref<3x64xf32, #tpu.memory_space<vmem>>, %arg4: memref<24x64xf32, #tpu.memory_space<vmem>>) attributes {dimension_semantics = [], scalar_prefetch = 0 : i64, scratch_operands = 0 : i64, tpu.core_type = #tpu.core_type<tc>} {
    %c0 = arith.constant 0 : index
    %c0_0 = arith.constant 0 : index
    %0 = vector.load %arg0[%c0, %c0_0] : memref<24x64xf32, #tpu.memory_space<vmem>>, vector<24x64xf32>
    %c0_1 = arith.constant 0 : index
    %c0_2 = arith.constant 0 : index
    %1 = vector.load %arg2[%c0_1, %c0_2] : memref<64x64xf32, #tpu.memory_space<vmem>>, vector<64x64xf32>
    %cst = arith.constant dense<0.000000e+00> : vector<24x64xf32>
    %2 = tpu.matmul %0, %1, %cst {dimension_numbers = #tpu.dot_dimension_numbers<[1], [0], [0], [1], [0, 0, 1, 1], [], []>} : vector<24x64xf32>, vector<64x64xf32>, vector<24x64xf32> -> vector<24x64xf32>
    %c0_3 = arith.constant 0 : index
    %c0_4 = arith.constant 0 : index
    %3 = vector.load %arg3[%c0_3, %c0_4] : memref<3x64xf32, #tpu.memory_space<vmem>>, vector<1x64xf32>
    %4 = vector.broadcast %3 : vector<1x64xf32> to vector<24x64xf32>
    %5 = arith.addf %2, %4 : vector<24x64xf32>
    %c0_5 = arith.constant 0 : index
    %c0_6 = arith.constant 0 : index
    %6 = vector.load %arg1[%c0_5, %c0_6] : memref<24x64xf32, #tpu.memory_space<vmem>>, vector<24x64xf32>
    %7 = arith.addf %5, %6 : vector<24x64xf32>
    %8 = vector.extract_strided_slice %7 {offsets = [0, 0], sizes = [24, 32], strides = [1, 1]} : vector<24x64xf32> to vector<24x32xf32>
    %9 = vector.extract_strided_slice %7 {offsets = [0, 32], sizes = [24, 32], strides = [1, 1]} : vector<24x64xf32> to vector<24x32xf32>
    %cst_7 = arith.constant dense<0.000000e+00> : vector<24xf32>
    %10 = vector.multi_reduction <add>, %8, %cst_7 [1] : vector<24x32xf32> to vector<24xf32>
    %11 = vector.shape_cast %10 : vector<24xf32> to vector<24x1xf32>
    %cst_8 = arith.constant 3.200000e+01 : f32
    %12 = vector.broadcast %cst_8 : f32 to vector<24x1xf32>
    %13 = arith.divf %11, %12 : vector<24x1xf32>
    %cst_9 = arith.constant dense<0.000000e+00> : vector<24xf32>
    %14 = vector.multi_reduction <add>, %9, %cst_9 [1] : vector<24x32xf32> to vector<24xf32>
    %15 = vector.shape_cast %14 : vector<24xf32> to vector<24x1xf32>
    %cst_10 = arith.constant 3.200000e+01 : f32
    %16 = vector.broadcast %cst_10 : f32 to vector<24x1xf32>
    %17 = arith.divf %15, %16 : vector<24x1xf32>
    %18 = vector.broadcast %13 : vector<24x1xf32> to vector<24x32xf32>
    %19 = arith.subf %8, %18 : vector<24x32xf32>
    %20 = arith.mulf %19, %19 : vector<24x32xf32>
    %cst_11 = arith.constant dense<0.000000e+00> : vector<24xf32>
    %21 = vector.multi_reduction <add>, %20, %cst_11 [1] : vector<24x32xf32> to vector<24xf32>
    %22 = vector.shape_cast %21 : vector<24xf32> to vector<24x1xf32>
    %cst_12 = arith.constant 3.200000e+01 : f32
    %23 = vector.broadcast %cst_12 : f32 to vector<24x1xf32>
    %24 = arith.divf %22, %23 : vector<24x1xf32>
    %25 = vector.broadcast %17 : vector<24x1xf32> to vector<24x32xf32>
    %26 = arith.subf %9, %25 : vector<24x32xf32>
    %27 = arith.mulf %26, %26 : vector<24x32xf32>
    %cst_13 = arith.constant dense<0.000000e+00> : vector<24xf32>
    %28 = vector.multi_reduction <add>, %27, %cst_13 [1] : vector<24x32xf32> to vector<24xf32>
    %29 = vector.shape_cast %28 : vector<24xf32> to vector<24x1xf32>
    %cst_14 = arith.constant 3.200000e+01 : f32
    %30 = vector.broadcast %cst_14 : f32 to vector<24x1xf32>
    %31 = arith.divf %29, %30 : vector<24x1xf32>
    %32 = tpu.iota {dimensions = array<i32: 1>} : vector<24x64xi32>
    %c32_i32 = arith.constant 32 : i32
    %33 = vector.broadcast %c32_i32 : i32 to vector<24x64xi32>
    %34 = arith.cmpi slt, %32, %33 : vector<24x64xi32>
    %35 = vector.shape_cast %13 : vector<24x1xf32> to vector<24x1xf32>
    %36 = vector.broadcast %35 : vector<24x1xf32> to vector<24x64xf32>
    %37 = vector.shape_cast %17 : vector<24x1xf32> to vector<24x1xf32>
    %38 = vector.broadcast %37 : vector<24x1xf32> to vector<24x64xf32>
    %39 = arith.select %34, %36, %38 : vector<24x64xi1>, vector<24x64xf32>
    %cst_15 = arith.constant 9.99999996E-13 : f32
    %40 = vector.broadcast %cst_15 : f32 to vector<24x1xf32>
    %41 = arith.addf %24, %40 : vector<24x1xf32>
    %42 = math.rsqrt %41 : vector<24x1xf32>
    %cst_16 = arith.constant 9.99999996E-13 : f32
    %43 = vector.broadcast %cst_16 : f32 to vector<24x1xf32>
    %44 = arith.addf %31, %43 : vector<24x1xf32>
    %45 = math.rsqrt %44 : vector<24x1xf32>
    %46 = vector.shape_cast %42 : vector<24x1xf32> to vector<24x1xf32>
    %47 = vector.broadcast %46 : vector<24x1xf32> to vector<24x64xf32>
    %48 = vector.shape_cast %45 : vector<24x1xf32> to vector<24x1xf32>
    %49 = vector.broadcast %48 : vector<24x1xf32> to vector<24x64xf32>
    %50 = arith.select %34, %47, %49 : vector<24x64xi1>, vector<24x64xf32>
    %c1 = arith.constant 1 : index
    %c0_17 = arith.constant 0 : index
    %51 = vector.load %arg3[%c1, %c0_17] : memref<3x64xf32, #tpu.memory_space<vmem>>, vector<1x64xf32>
    %c2 = arith.constant 2 : index
    %c0_18 = arith.constant 0 : index
    %52 = vector.load %arg3[%c2, %c0_18] : memref<3x64xf32, #tpu.memory_space<vmem>>, vector<1x64xf32>
    %53 = arith.subf %7, %39 : vector<24x64xf32>
    %54 = arith.mulf %53, %50 : vector<24x64xf32>
    %55 = vector.broadcast %51 : vector<1x64xf32> to vector<24x64xf32>
    %56 = arith.mulf %54, %55 : vector<24x64xf32>
    %57 = vector.broadcast %52 : vector<1x64xf32> to vector<24x64xf32>
    %58 = arith.addf %56, %57 : vector<24x64xf32>
    %c0_19 = arith.constant 0 : index
    %c0_20 = arith.constant 0 : index
    %59 = vector.load %arg4[%c0_19, %c0_20] : memref<24x64xf32, #tpu.memory_space<vmem>>, vector<24x64xf32>
    tpu.vector_store %arg4[%c0_19, %c0_20], %58 {strides = array<i32>} : memref<24x64xf32, #tpu.memory_space<vmem>>, vector<24x64xf32>,
    return
  }
}

</mosaic_0001>

<llo_original>
// kernel: entity_aware_bert_output.1
$region0: #{entity_aware_bert_output.1}
  #allocation0 [shape = 'u32[]', space=smem, size = 0x4, offset = 0x4, fixed_abs, tag = 'smem constant byte address 0x4 - core index']
  #allocation1 [shape = 'u32[144,128]{1,0:T(1,128)}', space=vmem, size = 0x12000, scoped, tag = 'internal scratch']
  %s0 = inlined_call_operand.vmem [shape: f32[24,64], index: 0, kind: input, shape index: {}]
  %s1 = inlined_call_operand.vmem [shape: f32[24,64], index: 1, kind: input, shape index: {}]
  %s2 = inlined_call_operand.vmem [shape: f32[64,64], index: 2, kind: input, shape index: {}]
  %s3 = inlined_call_operand.vmem [shape: f32[3,64], index: 3, kind: input, shape index: {}]
  %s4 = inlined_call_operand.vmem [shape: f32[24,64], index: 4, kind: output, shape index: {}]
  %s5 = sld [smem:[#allocation0]]
  $region26: #{entity_aware_bert_output.1} parent=0
    _
  %s7 = ssub.s32 1, %s5
  %s8 = scalar_select 0, %s7, %s5
  // Predicated region
  $region2: #{entity_aware_bert_output.1} parent=0 // pred_check
    _
  $region3: #{entity_aware_bert_output.1} parent=0 // pred_check_branch
    %10 = sbr.rel (0) target = $region5
  $region4: #{entity_aware_bert_output.1} parent=0 // pred_region
    _
  $region5: #{entity_aware_bert_output.1} parent=0 // pred_fallthru
    _
  // Predicated region
  $region6: #{entity_aware_bert_output.1} parent=0 // pred_check
    _
  $region7: #{entity_aware_bert_output.1} parent=0 // pred_check_branch
    %12 = sbr.rel (0) target = $region9
  $region8: #{entity_aware_bert_output.1} parent=0 // pred_region
    _
  $region9: #{entity_aware_bert_output.1} parent=0 // pred_fallthru
    _
  // Predicated region
  $region10: #{entity_aware_bert_output.1} parent=0 // pred_check
    _
  $region11: #{entity_aware_bert_output.1} parent=0 // pred_check_branch
    %14 = sbr.rel (0) target = $region13
  $region12: #{entity_aware_bert_output.1} parent=0 // pred_region
    _
  $region13: #{entity_aware_bert_output.1} parent=0 // pred_fallthru
    _
  // Predicated region
  $region14: #{entity_aware_bert_output.1} parent=0 // pred_check
    _
  $region15: #{entity_aware_bert_output.1} parent=0 // pred_check_branch
    %16 = sbr.rel (0) target = $region17
  $region16: #{entity_aware_bert_output.1} parent=0 // pred_region
    _
  $region17: #{entity_aware_bert_output.1} parent=0 // pred_fallthru
    _
  %v17 = vld [vmem:[%s0] sm:$0xff]
  %v18 = vld [vmem:[%s0 + $0x8] sm:$0xff]
  %v19 = vld [vmem:[%s0 + $0x10] sm:$0xff]
  %v20 = vld [vmem:[%s2] sm:$0xff]
  %v21 = vld [vmem:[%s2 + $0x8] sm:$0xff]
  %v22 = vld [vmem:[%s2 + $0x10] sm:$0xff]
  %v23 = vld [vmem:[%s2 + $0x18] sm:$0xff]
  %v24 = vld [vmem:[%s2 + $0x20] sm:$0xff]
  %v25 = vld [vmem:[%s2 + $0x28] sm:$0xff]
  %v26 = vld [vmem:[%s2 + $0x30] sm:$0xff]
  %v27 = vld [vmem:[%s2 + $0x38] sm:$0xff]
  %v28 = vld [vmem:[%s3] sm:$0x1]
  %v29 = vlaneseq
  %v30 = vshrl.u32 %v29, 7
  %v31 = vsub.s32 0, %v30
  %v32 = vrot.slane %v28, %v31
  %vm33 = vcmask 523264
  %v35 = vsel %vm33, %v17, 0
  %v38 = vsel %vm33, %v18, 0
  %v41 = vsel %vm33, %v19, 0
  %43 = vmatprep.subr.mxu0 0.0
  %44 = vmatpush1.msra.mxu0 %v20
  %45 = vmatprep.subr.mxu0 0.0
  %46 = vmatpush1.msra.mxu0 %v21
  %47 = vmatprep.subr.mxu0 0.0
  %48 = vmatpush1.msra.mxu0 %v22
  %49 = vmatprep.subr.mxu0 0.0
  %50 = vmatpush1.msra.mxu0 %v23
  %51 = vmatprep.subr.mxu0 0.0
  %52 = vmatpush1.msra.mxu0 %v24
  %53 = vmatprep.subr.mxu0 0.0
  %54 = vmatpush1.msra.mxu0 %v25
  %55 = vmatprep.subr.mxu0 0.0
  %56 = vmatpush1.msra.mxu0 %v26
  %57 = vmatprep.subr.mxu0 0.0
  %58 = vmatpush1.msra.mxu0 %v27
  %59 = vmatprep.subr.mxu0 0.0
  %60 = vmatpush1.msra.mxu0 0.0
  %61 = vmatprep.subr.mxu0 0.0
  %62 = vmatpush1.msra.mxu0 0.0
  %63 = vmatprep.subr.mxu0 0.0
  %64 = vmatpush1.msra.mxu0 0.0
  %65 = vmatprep.subr.mxu0 0.0
  %66 = vmatpush1.msra.mxu0 0.0
  %67 = vmatprep.subr.mxu0 0.0
  %68 = vmatpush1.msra.mxu0 0.0
  %69 = vmatprep.subr.mxu0 0.0
  %70 = vmatpush1.msra.mxu0 0.0
  %71 = vmatprep.subr.mxu0 0.0
  %72 = vmatpush1.msra.mxu0 0.0
  %73 = vmatprep.subr.mxu0 0.0
  %74 = vmatpush1.msra.mxu0 0.0
  %75 = vmatprep.subr.mxu0 0.0
  %76 = vmatpush1.msra.mxu0 0.0
  %77 = vmatprep.subr.mxu0 0.0
  %78 = vmatpush1.msra.mxu0 0.0
  %79 = vmatprep.subr.mxu0 0.0
  %80 = vmatpush1.msra.mxu0 0.0
  %81 = vmatprep.subr.mxu0 0.0
  %82 = vmatpush1.msra.mxu0 0.0
  %83 = vmatprep.subr.mxu0 0.0
  %84 = vmatpush1.msra.mxu0 0.0
  %85 = vmatprep.subr.mxu0 0.0
  %86 = vmatpush1.msra.mxu0 0.0
  %87 = vmatprep.subr.mxu0 0.0
  %88 = vmatpush1.msra.mxu0 0.0
  %89 = vmatprep.subr.mxu0 0.0
  %90 = vmatpush1.msra.mxu0 0.0
  %91 = vmatprep.subr.mxu0 0.0
  %92 = vmatpush1.msra.mxu0 0.0
  %93 = vmatprep.subr.mxu0 0.0
  %94 = vmatpush1.msra.mxu0 0.0
  %95 = vmatprep.subr.mxu0 0.0
  %96 = vmatpush1.msra.mxu0 0.0
  %97 = vmatprep.subr.mxu0 0.0
  %98 = vmatpush1.msra.mxu0 0.0
  %99 = vmatprep.subr.mxu0 0.0
  %100 = vmatpush1.msra.mxu0 0.0
  %101 = vmatprep.subr.mxu0 0.0
  %102 = vmatpush1.msra.mxu0 0.0
  %103 = vmatprep.subr.mxu0 0.0
  %104 = vmatpush1.msra.mxu0 0.0
  %105 = vmatprep.subr.mxu0 0.0
  %106 = vmatpush1.msra.mxu0 0.0
  %107 = vmatprep.mubr.f32.mxu0 0.0
  %108 = vmatmul.mubr.f32.gmra.mrb[0].mxu0 %v35
  %v109 = vpop.f32.mrb[0].mxu0
  %v110 = vadd.f32 %v32, %v109
  %v111 = vpop.f32.mrb[0].mxu0
  %112 = vmatprep.mubr.f32.mxu0 0.0
  %113 = vmatmul.mubr.f32.gmra.mrb[0].mxu0 %v38
  %v114 = vpop.f32.mrb[0].mxu0
  %v115 = vadd.f32 %v32, %v114
  %v116 = vpop.f32.mrb[0].mxu0
  %117 = vmatprep.mubr.f32.mxu0 0.0
  %118 = vmatmul.mubr.f32.gmra.mrb[0].mxu0 %v41
  %v119 = vpop.f32.mrb[0].mxu0
  %v120 = vadd.f32 %v32, %v119
  %v121 = vpop.f32.mrb[0].mxu0
  %122 = vdwg.mxu0
  %v123 = vld [vmem:[%s1] sm:$0xff]
  %v124 = vld [vmem:[%s1 + $0x8] sm:$0xff]
  %v125 = vld [vmem:[%s1 + $0x10] sm:$0xff]
  %v126 = vadd.f32 %v110, %v123
  %v127 = vadd.f32 %v115, %v124
  %v128 = vadd.f32 %v120, %v125
  %vm129 = vcmask 261120
  %v130 = vsel %vm129, %v126, 0.0
  %131 = vadd.xlane.f32.xlu0 %v130
  %v132 = vpop.xlane.xlu0 %131
  %v133 = vsel %vm129, %v127, 0.0
  %134 = vadd.xlane.f32.xlu0 %v133
  %v135 = vpop.xlane.xlu0 %134
  %v136 = vsel %vm129, %v128, 0.0
  %137 = vadd.xlane.f32.xlu0 %v136
  %v138 = vpop.xlane.xlu0 %137
  %v139 = vrcp.pop 32.0
  %v140 = vmul.f32 %v132, %v139
  %v141 = vmul.f32 %v135, %v139
  %v142 = vmul.f32 %v138, %v139
  %146 = vrot.lane.b32.xlu0 %v126, 96
  %v147 = vpop.permute.xlu0 %146
  %148 = vrot.lane.b32.xlu0 %v127, 96
  %v149 = vpop.permute.xlu0 %148
  %150 = vrot.lane.b32.xlu0 %v128, 96
  %v151 = vpop.permute.xlu0 %150
  %v155 = vsel %vm129, %v147, 0.0
  %156 = vadd.xlane.f32.xlu0 %v155
  %v157 = vpop.xlane.xlu0 %156
  %v158 = vsel %vm129, %v149, 0.0
  %159 = vadd.xlane.f32.xlu0 %v158
  %v160 = vpop.xlane.xlu0 %159
  %v161 = vsel %vm129, %v151, 0.0
  %162 = vadd.xlane.f32.xlu0 %v161
  %v163 = vpop.xlane.xlu0 %162
  %v164 = vmul.f32 %v157, %v139
  %v165 = vmul.f32 %v160, %v139
  %v166 = vmul.f32 %v163, %v139
  %v167 = vsub.f32 %v126, %v140
  %v168 = vsub.f32 %v127, %v141
  %v169 = vsub.f32 %v128, %v142
  %v170 = vmul.f32 %v167, %v167
  %v171 = vmul.f32 %v168, %v168
  %v172 = vmul.f32 %v169, %v169
  %v173 = vsel %vm129, %v170, 0.0
  %174 = vadd.xlane.f32.xlu0 %v173
  %v175 = vpop.xlane.xlu0 %174
  %v176 = vsel %vm129, %v171, 0.0
  %177 = vadd.xlane.f32.xlu0 %v176
  %v178 = vpop.xlane.xlu0 %177
  %v179 = vsel %vm129, %v172, 0.0
  %180 = vadd.xlane.f32.xlu0 %v179
  %v181 = vpop.xlane.xlu0 %180
  %v182 = vmul.f32 %v175, %v139
  %v183 = vmul.f32 %v178, %v139
  %v184 = vmul.f32 %v181, %v139
  %v185 = vsub.f32 %v126, %v164
  %v186 = vsub.f32 %v127, %v165
  %v187 = vsub.f32 %v128, %v166
  %v188 = vmul.f32 %v185, %v185
  %v189 = vmul.f32 %v186, %v186
  %v190 = vmul.f32 %v187, %v187
  %194 = vrot.lane.b32.xlu0 %v188, 96
  %v195 = vpop.permute.xlu0 %194
  %196 = vrot.lane.b32.xlu0 %v189, 96
  %v197 = vpop.permute.xlu0 %196
  %198 = vrot.lane.b32.xlu0 %v190, 96
  %v199 = vpop.permute.xlu0 %198
  %v203 = vsel %vm129, %v195, 0.0
  %204 = vadd.xlane.f32.xlu0 %v203
  %v205 = vpop.xlane.xlu0 %204
  %v206 = vsel %vm129, %v197, 0.0
  %207 = vadd.xlane.f32.xlu0 %v206
  %v208 = vpop.xlane.xlu0 %207
  %v209 = vsel %vm129, %v199, 0.0
  %210 = vadd.xlane.f32.xlu0 %v209
  %v211 = vpop.xlane.xlu0 %210
  %v212 = vmul.f32 %v205, %v139
  %v213 = vmul.f32 %v208, %v139
  %v214 = vmul.f32 %v211, %v139
  %v215 = vlaneseq
  %v216 = vand.u32 %v215, 127
  %vm217 = vcmp.lt.s32.totalorder %v216, 32
  %v218 = vsel %vm217, %v140, %v164
  %v219 = vsel %vm217, %v141, %v165
  %v220 = vsel %vm217, %v142, %v166
  %v221 = vadd.f32 %v182, 1e-12
  %v222 = vadd.f32 %v183, 1e-12
  %v223 = vadd.f32 %v184, 1e-12
  %v224 = vrsqrt.pop %v221
  %v225 = vrsqrt.pop %v222
  %v226 = vrsqrt.pop %v223
  %v227 = vadd.f32 %v212, 1e-12
  %v228 = vadd.f32 %v213, 1e-12
  %v229 = vadd.f32 %v214, 1e-12
  %v230 = vrsqrt.pop %v227
  %v231 = vrsqrt.pop %v228
  %v232 = vrsqrt.pop %v229
  %v233 = vsel %vm217, %v224, %v230
  %v234 = vsel %vm217, %v225, %v231
  %v235 = vsel %vm217, %v226, %v232
  %v236 = vld [vmem:[%s3 + $0x1] sm:$0x1]
  %v237 = vld [vmem:[%s3 + $0x2] sm:$0x1]
  %v238 = vsub.f32 %v126, %v218
  %v239 = vsub.f32 %v127, %v219
  %v240 = vsub.f32 %v128, %v220
  %v241 = vmul.f32 %v238, %v233
  %v242 = vmul.f32 %v239, %v234
  %v243 = vmul.f32 %v240, %v235
  %v244 = vlaneseq
  %v245 = vshrl.u32 %v244, 7
  %v246 = vsub.s32 0, %v245
  %v247 = vrot.slane %v236, %v246
  %v248 = vmul.f32 %v241, %v247
  %v249 = vmul.f32 %v242, %v247
  %v250 = vmul.f32 %v243, %v247
  %v251 = vlaneseq
  %v252 = vshrl.u32 %v251, 7
  %v253 = vsub.s32 0, %v252
  %v254 = vrot.slane %v237, %v253
  %v255 = vadd.f32 %v248, %v254
  %v256 = vadd.f32 %v249, %v254
  %v257 = vadd.f32 %v250, %v254
  %258 = vst.msk [vmem:[%s4] sm:$0xff] %vm33, %v255
  %259 = vst.msk [vmem:[%s4 + $0x8] sm:$0xff] %vm33, %v256
  %260 = vst.msk [vmem:[%s4 + $0x10] sm:$0xff] %vm33, %v257
  // Predicated region
  $region18: #{entity_aware_bert_output.1} parent=0 // pred_check
    _
  $region19: #{entity_aware_bert_output.1} parent=0 // pred_check_branch
    %262 = sbr.rel (0) target = $region21
  $region20: #{entity_aware_bert_output.1} parent=0 // pred_region
    _
  $region21: #{entity_aware_bert_output.1} parent=0 // pred_fallthru
    _
  // Predicated region
  $region22: #{entity_aware_bert_output.1} parent=0 // pred_check
    _
  $region23: #{entity_aware_bert_output.1} parent=0 // pred_check_branch
    %264 = sbr.rel (0) target = $region25
  $region24: #{entity_aware_bert_output.1} parent=0 // pred_region
    _
  $region25: #{entity_aware_bert_output.1} parent=0 // pred_fallthru
    _

</llo_original>
